<compile_context>
chip_gen: v7x
topology: tpu7x:2x2x1
jax: 0.10.0
libtpu: 0.0.40
codegen_flags: <defaults>
</compile_context>

<pallas_src>
import functools

import jax
import jax.numpy as jnp
import numpy as np
from jax import lax
from jax.experimental import pallas as pl
from jax.experimental.pallas import tpu as pltpu


# ------------------------------- fused kernel -------------------------------

def _turin_fused_kernel(x_ref, w1_ref, b1_ref, w2_ref, b2_ref,
                        wf1_ref, bf1_ref, wf2_ref, bf2_ref,
                        embed_ref, out_ref, *, t, n):
    # shared_fc1 + ReLU:                      (t*n, 4) @ (4, H) -> (t*n, H)
    h = jnp.dot(x_ref[...], w1_ref[...],
                preferred_element_type=jnp.float32) + b1_ref[...]
    h = jnp.maximum(h, 0.0)

    # shared_fc2:                             (t*n, H) @ (H, 20) -> (t*n, 20)
    h = jnp.dot(h, w2_ref[...],
                preferred_element_type=jnp.float32) + b2_ref[...]

    # embed = sum over the N axis / t.  Rows of h are ordered (t, N) row-major,
    # so group i is the contiguous row block [i*n, (i+1)*n).  t static sublane
    # reductions (VPU) formed in-register and concatenated; embed is written
    # once and reused directly (no readback from VMEM).
    inv_t = 1.0 / float(t)
    groups = [jnp.sum(h[i * n:(i + 1) * n, :], axis=0, keepdims=True) * inv_t
              for i in range(t)]
    embed = groups[0] if t == 1 else jnp.concatenate(groups, axis=0)  # (t, 20)
    embed_ref[...] = embed

    # fc1 + ReLU:                             (t, 20) @ (20, 20)
    z = jnp.dot(embed, wf1_ref[...],
                preferred_element_type=jnp.float32) + bf1_ref[...]
    z = jnp.maximum(z, 0.0)

    # fc2:                                    (t, 20) @ (20, 8)
    out_ref[...] = jnp.dot(z, wf2_ref[...],
                           preferred_element_type=jnp.float32) + bf2_ref[...]


# ------------------------------ pallas wrapper -------------------------------

_VMEM_SPEC = pl.BlockSpec(memory_space=pltpu.MemorySpace.VMEM)


def turin_summary_forward(x, prepared, *, N):
    """x: (t, N, 4) (or anything reshaping to (t*N, 4)); returns (embed, out)."""
    t = x.shape[0]
    x2d = jnp.asarray(x, jnp.float32).reshape(t * N, 4)

    args = (x2d,
            prepared["w1t"], prepared["b1"],
            prepared["w2t"], prepared["b2"],
            prepared["wf1t"], prepared["bf1"],
            prepared["wf2t"], prepared["bf2"])

    embed, out = pl.pallas_call(
        functools.partial(_turin_fused_kernel, t=t, n=N),
        out_shape=(jax.ShapeDtypeStruct((t, 20), jnp.float32),
                   jax.ShapeDtypeStruct((t, 8), jnp.float32)),
        in_specs=[_VMEM_SPEC] * len(args),
        out_specs=(_VMEM_SPEC, _VMEM_SPEC),
    )(*args)
    return embed, out


# -------------------------------- parameters ---------------------------------

def init_params(key, input_size=4, hidden_dim=32):
    """Deterministic PyTorch-style (uniform +-1/sqrt(fan_in)) Linear params."""
    ks = jax.random.split(key, 8)

    def u(k, shape, fan_in):
        bound = 1.0 / np.sqrt(fan_in)
        return jax.random.uniform(k, shape, jnp.float32, -bound, bound)

    H = hidden_dim
    return {
        "w1": u(ks[0], (H, input_size), input_size),  "b1": u(ks[1], (H,), input_size),
        "w2": u(ks[2], (20, H), H),                   "b2": u(ks[3], (20,), H),
        "wf1": u(ks[4], (20, 20), 20),                "bf1": u(ks[5], (20,), 20),
        "wf2": u(ks[6], (8, 20), 20),                 "bf2": u(ks[7], (8,), 20),
    }


def prepare_params(params):
    # Hoisted once per parameter set: the kernel consumes pre-transposed
    # weights and (1, out)-shaped biases, so the per-call forward path carries
    # no XLA transpose/reshape glue.
    return {
        "w1t": params["w1"].T,   "b1": params["b1"].reshape(1, -1),
        "w2t": params["w2"].T,   "b2": params["b2"].reshape(1, -1),
        "wf1t": params["wf1"].T, "bf1": params["bf1"].reshape(1, -1),
        "wf2t": params["wf2"].T, "bf2": params["bf2"].reshape(1, -1),
    }


# ----------------------------- pure-JAX reference ----------------------------

def turin_reference(x, params, N):
    t = x.shape[0]
    hp = lax.Precision.HIGHEST
    x2 = jnp.asarray(x, jnp.float32).reshape(-1, 4)
    h = jnp.maximum(jnp.dot(x2, params["w1"].T, precision=hp) + params["b1"], 0.0)
    h = (jnp.dot(h, params["w2"].T, precision=hp) + params["b2"]).reshape(t, N, 20)
    embed = jnp.sum(h, axis=1) / t
    z = jnp.maximum(jnp.dot(embed, params["wf1"].T, precision=hp) + params["bf1"], 0.0)
    out = jnp.dot(z, params["wf2"].T, precision=hp) + params["bf2"]
    return embed, out


# ------------------------------------ main -----------------------------------

if __name__ == "__main__":
    key = jax.random.PRNGKey(0)
    kp, kd = jax.random.split(key)

    input_size, hidden_dim, N, t = 4, 32, 8, 2
    params = init_params(kp, input_size, hidden_dim)
    prepared = prepare_params(params)

    x = jax.random.normal(kd, (t, N, input_size), jnp.float32)

    fwd = jax.jit(functools.partial(turin_summary_forward, N=N))
    embed, out = jax.block_until_ready(fwd(x, prepared))

    embed_r, out_r = turin_reference(x, params, N)
    # 2e-3 tolerance covers MXU default-precision f32 passes vs HIGHEST reference.
    np.testing.assert_allclose(np.asarray(embed), np.asarray(embed_r),
                               rtol=2e-3, atol=2e-3)
    np.testing.assert_allclose(np.asarray(out), np.asarray(out_r),
                               rtol=2e-3, atol=2e-3)

    assert embed.shape == (t, 20)
    assert out.shape == (t, 8)
    print("KERNEL_OK")
</pallas_src>

<mosaic_0001>
module attributes {stable_mosaic.version = 11 : i64} {
  func.func @_turin_fused_kernel(%arg0: memref<16x4xf32, #tpu.memory_space<vmem>>, %arg1: memref<4x32xf32, #tpu.memory_space<vmem>>, %arg2: memref<1x32xf32, #tpu.memory_space<vmem>>, %arg3: memref<32x20xf32, #tpu.memory_space<vmem>>, %arg4: memref<1x20xf32, #tpu.memory_space<vmem>>, %arg5: memref<20x20xf32, #tpu.memory_space<vmem>>, %arg6: memref<1x20xf32, #tpu.memory_space<vmem>>, %arg7: memref<20x8xf32, #tpu.memory_space<vmem>>, %arg8: memref<1x8xf32, #tpu.memory_space<vmem>>, %arg9: memref<2x20xf32, #tpu.memory_space<vmem>>, %arg10: memref<2x8xf32, #tpu.memory_space<vmem>>) attributes {dimension_semantics = [], scalar_prefetch = 0 : i64, scratch_operands = 0 : i64, tpu.core_type = #tpu.core_type<tc>} {
    %c0 = arith.constant 0 : index
    %c0_0 = arith.constant 0 : index
    %0 = vector.load %arg0[%c0, %c0_0] : memref<16x4xf32, #tpu.memory_space<vmem>>, vector<16x4xf32>
    %c0_1 = arith.constant 0 : index
    %c0_2 = arith.constant 0 : index
    %1 = vector.load %arg1[%c0_1, %c0_2] : memref<4x32xf32, #tpu.memory_space<vmem>>, vector<4x32xf32>
    %cst = arith.constant dense<0.000000e+00> : vector<16x32xf32>
    %2 = tpu.matmul %0, %1, %cst {dimension_numbers = #tpu.dot_dimension_numbers<[1], [0], [0], [1], [0, 0, 1, 1], [], []>} : vector<16x4xf32>, vector<4x32xf32>, vector<16x32xf32> -> vector<16x32xf32>
    %c0_3 = arith.constant 0 : index
    %c0_4 = arith.constant 0 : index
    %3 = vector.load %arg2[%c0_3, %c0_4] : memref<1x32xf32, #tpu.memory_space<vmem>>, vector<1x32xf32>
    %4 = vector.broadcast %3 : vector<1x32xf32> to vector<16x32xf32>
    %5 = arith.addf %2, %4 : vector<16x32xf32>
    %cst_5 = arith.constant 0.000000e+00 : f32
    %6 = vector.broadcast %cst_5 : f32 to vector<16x32xf32>
    %7 = arith.maximumf %5, %6 : vector<16x32xf32>
    %c0_6 = arith.constant 0 : index
    %c0_7 = arith.constant 0 : index
    %8 = vector.load %arg3[%c0_6, %c0_7] : memref<32x20xf32, #tpu.memory_space<vmem>>, vector<32x20xf32>
    %cst_8 = arith.constant dense<0.000000e+00> : vector<16x20xf32>
    %9 = tpu.matmul %7, %8, %cst_8 {dimension_numbers = #tpu.dot_dimension_numbers<[1], [0], [0], [1], [0, 0, 1, 1], [], []>} : vector<16x32xf32>, vector<32x20xf32>, vector<16x20xf32> -> vector<16x20xf32>
    %c0_9 = arith.constant 0 : index
    %c0_10 = arith.constant 0 : index
    %10 = vector.load %arg4[%c0_9, %c0_10] : memref<1x20xf32, #tpu.memory_space<vmem>>, vector<1x20xf32>
    %11 = vector.broadcast %10 : vector<1x20xf32> to vector<16x20xf32>
    %12 = arith.addf %9, %11 : vector<16x20xf32>
    %13 = vector.extract_strided_slice %12 {offsets = [0, 0], sizes = [8, 20], strides = [1, 1]} : vector<16x20xf32> to vector<8x20xf32>
    %cst_11 = arith.constant dense<0.000000e+00> : vector<20xf32>
    %14 = vector.multi_reduction <add>, %13, %cst_11 [0] : vector<8x20xf32> to vector<20xf32>
    %15 = vector.shape_cast %14 : vector<20xf32> to vector<1x20xf32>
    %cst_12 = arith.constant 5.000000e-01 : f32
    %16 = vector.broadcast %cst_12 : f32 to vector<1x20xf32>
    %17 = arith.mulf %15, %16 : vector<1x20xf32>
    %18 = vector.extract_strided_slice %12 {offsets = [8, 0], sizes = [8, 20], strides = [1, 1]} : vector<16x20xf32> to vector<8x20xf32>
    %cst_13 = arith.constant dense<0.000000e+00> : vector<20xf32>
    %19 = vector.multi_reduction <add>, %18, %cst_13 [0] : vector<8x20xf32> to vector<20xf32>
    %20 = vector.shape_cast %19 : vector<20xf32> to vector<1x20xf32>
    %cst_14 = arith.constant 5.000000e-01 : f32
    %21 = vector.broadcast %cst_14 : f32 to vector<1x20xf32>
    %22 = arith.mulf %20, %21 : vector<1x20xf32>
    %23 = tpu.concatenate %17, %22 in 0 : vector<1x20xf32>, vector<1x20xf32> -> vector<2x20xf32>
    %c0_15 = arith.constant 0 : index
    %c0_16 = arith.constant 0 : index
    %24 = vector.load %arg9[%c0_15, %c0_16] : memref<2x20xf32, #tpu.memory_space<vmem>>, vector<2x20xf32>
    tpu.vector_store %arg9[%c0_15, %c0_16], %23 {strides = array<i32>} : memref<2x20xf32, #tpu.memory_space<vmem>>, vector<2x20xf32>,
    %c0_17 = arith.constant 0 : index
    %c0_18 = arith.constant 0 : index
    %25 = vector.load %arg5[%c0_17, %c0_18] : memref<20x20xf32, #tpu.memory_space<vmem>>, vector<20x20xf32>
    %cst_19 = arith.constant dense<0.000000e+00> : vector<2x20xf32>
    %26 = tpu.matmul %23, %25, %cst_19 {dimension_numbers = #tpu.dot_dimension_numbers<[1], [0], [0], [1], [0, 0, 1, 1], [], []>} : vector<2x20xf32>, vector<20x20xf32>, vector<2x20xf32> -> vector<2x20xf32>
    %c0_20 = arith.constant 0 : index
    %c0_21 = arith.constant 0 : index
    %27 = vector.load %arg6[%c0_20, %c0_21] : memref<1x20xf32, #tpu.memory_space<vmem>>, vector<1x20xf32>
    %28 = vector.broadcast %27 : vector<1x20xf32> to vector<2x20xf32>
    %29 = arith.addf %26, %28 : vector<2x20xf32>
    %cst_22 = arith.constant 0.000000e+00 : f32
    %30 = vector.broadcast %cst_22 : f32 to vector<2x20xf32>
    %31 = arith.maximumf %29, %30 : vector<2x20xf32>
    %c0_23 = arith.constant 0 : index
    %c0_24 = arith.constant 0 : index
    %32 = vector.load %arg7[%c0_23, %c0_24] : memref<20x8xf32, #tpu.memory_space<vmem>>, vector<20x8xf32>
    %cst_25 = arith.constant dense<0.000000e+00> : vector<2x8xf32>
    %33 = tpu.matmul %31, %32, %cst_25 {dimension_numbers = #tpu.dot_dimension_numbers<[1], [0], [0], [1], [0, 0, 1, 1], [], []>} : vector<2x20xf32>, vector<20x8xf32>, vector<2x8xf32> -> vector<2x8xf32>
    %c0_26 = arith.constant 0 : index
    %c0_27 = arith.constant 0 : index
    %34 = vector.load %arg8[%c0_26, %c0_27] : memref<1x8xf32, #tpu.memory_space<vmem>>, vector<1x8xf32>
    %35 = vector.broadcast %34 : vector<1x8xf32> to vector<2x8xf32>
    %36 = arith.addf %33, %35 : vector<2x8xf32>
    %c0_28 = arith.constant 0 : index
    %c0_29 = arith.constant 0 : index
    %37 = vector.load %arg10[%c0_28, %c0_29] : memref<2x8xf32, #tpu.memory_space<vmem>>, vector<2x8xf32>
    tpu.vector_store %arg10[%c0_28, %c0_29], %36 {strides = array<i32>} : memref<2x8xf32, #tpu.memory_space<vmem>>, vector<2x8xf32>,
    return
  }
}

</mosaic_0001>

<llo_original>
// kernel: turin_summary_forward.1
$region0: #{turin_summary_forward.1}
  #allocation0 [shape = 'u32[]', space=smem, size = 0x4, offset = 0x4, fixed_abs, tag = 'smem constant byte address 0x4 - core index']
  #allocation1 [shape = 'u32[144,128]{1,0:T(1,128)}', space=vmem, size = 0x12000, scoped, tag = 'internal scratch']
  %s0 = inlined_call_operand.vmem [shape: f32[16,4], index: 0, kind: input, shape index: {}]
  %s1 = inlined_call_operand.vmem [shape: f32[4,32], index: 1, kind: input, shape index: {}]
  %s2 = inlined_call_operand.vmem [shape: f32[1,32], index: 2, kind: input, shape index: {}]
  %s3 = inlined_call_operand.vmem [shape: f32[32,20], index: 3, kind: input, shape index: {}]
  %s4 = inlined_call_operand.vmem [shape: f32[1,20], index: 4, kind: input, shape index: {}]
  %s5 = inlined_call_operand.vmem [shape: f32[20,20], index: 5, kind: input, shape index: {}]
  %s6 = inlined_call_operand.vmem [shape: f32[1,20], index: 6, kind: input, shape index: {}]
  %s7 = inlined_call_operand.vmem [shape: f32[20,8], index: 7, kind: input, shape index: {}]
  %s8 = inlined_call_operand.vmem [shape: f32[1,8], index: 8, kind: input, shape index: {}]
  %s9 = inlined_call_operand.hbm [shape: f32[2,20], index: 9, kind: output, shape index: {0}]
  %s10 = inlined_call_operand.hbm [shape: f32[2,8], index: 10, kind: output, shape index: {1}]
  %11 = xla_tuple %s9, %s10
  %s12 = sld [smem:[#allocation0]]
  $region54: #{turin_summary_forward.1} parent=0
    _
  %s14 = ssub.s32 1, %s12
  %s15 = scalar_select 0, %s14, %s12
  $region1: #{turin_summary_forward.1} parent=0
    #allocation2 [shape = 'u8[1024]{0}', space=vmem, size = 0x400, scoped, tag = 'output window, operand 0, single buffered']
    #allocation3 [shape = 's32[1]{0}', space=sflag, size = 0x4, scoped, tag = 'scoped memory for turin_summary_forward.1']
    #allocation4 [shape = 'u8[1024]{0}', space=vmem, size = 0x400, scoped, tag = 'output window, operand 1, single buffered']
    #allocation5 [shape = 's32[1]{0}', space=sflag, size = 0x4, scoped, tag = 'scoped memory for turin_summary_forward.1']
    %16 = vsyncpa [#allocation3], 0
    %17 = vsyncpa [#allocation5], 0
    // Predicated region
    $region2: #{turin_summary_forward.1} parent=1 // pred_check
      _
    $region3: #{turin_summary_forward.1} parent=1 // pred_check_branch
      %19 = sbr.rel (0) target = $region5
    $region4: #{turin_summary_forward.1} parent=1 // pred_region
      _
    $region5: #{turin_summary_forward.1} parent=1 // pred_fallthru
      _
    // Predicated region
    $region6: #{turin_summary_forward.1} parent=1 // pred_check
      _
    $region7: #{turin_summary_forward.1} parent=1 // pred_check_branch
      %21 = sbr.rel (0) target = $region9
    $region8: #{turin_summary_forward.1} parent=1 // pred_region
      _
    $region9: #{turin_summary_forward.1} parent=1 // pred_fallthru
      _
    // Predicated region
    $region10: #{turin_summary_forward.1} parent=1 // pred_check
      _
    $region11: #{turin_summary_forward.1} parent=1 // pred_check_branch
      %23 = sbr.rel (0) target = $region13
    $region12: #{turin_summary_forward.1} parent=1 // pred_region
      _
    $region13: #{turin_summary_forward.1} parent=1 // pred_fallthru
      _
    // Predicated region
    $region14: #{turin_summary_forward.1} parent=1 // pred_check
      _
    $region15: #{turin_summary_forward.1} parent=1 // pred_check_branch
      %25 = sbr.rel (0) target = $region17
    $region16: #{turin_summary_forward.1} parent=1 // pred_region
      _
    $region17: #{turin_summary_forward.1} parent=1 // pred_fallthru
      _
    // Predicated region
    $region18: #{turin_summary_forward.1} parent=1 // pred_check
      _
    $region19: #{turin_summary_forward.1} parent=1 // pred_check_branch
      %27 = sbr.rel (0) target = $region21
    $region20: #{turin_summary_forward.1} parent=1 // pred_region
      _
    $region21: #{turin_summary_forward.1} parent=1 // pred_fallthru
      _
    // Predicated region
    $region22: #{turin_summary_forward.1} parent=1 // pred_check
      _
    $region23: #{turin_summary_forward.1} parent=1 // pred_check_branch
      %29 = sbr.rel (0) target = $region25
    $region24: #{turin_summary_forward.1} parent=1 // pred_region
      _
    $region25: #{turin_summary_forward.1} parent=1 // pred_fallthru
      _
    // Predicated region
    $region26: #{turin_summary_forward.1} parent=1 // pred_check
      _
    $region27: #{turin_summary_forward.1} parent=1 // pred_check_branch
      %31 = sbr.rel (0) target = $region29
    $region28: #{turin_summary_forward.1} parent=1 // pred_region
      _
    $region29: #{turin_summary_forward.1} parent=1 // pred_fallthru
      _
    // Predicated region
    $region30: #{turin_summary_forward.1} parent=1 // pred_check
      _
    $region31: #{turin_summary_forward.1} parent=1 // pred_check_branch
      %33 = sbr.rel (0) target = $region33
    $region32: #{turin_summary_forward.1} parent=1 // pred_region
      _
    $region33: #{turin_summary_forward.1} parent=1 // pred_fallthru
      _
    // Predicated region
    $region34: #{turin_summary_forward.1} parent=1 // pred_check
      _
    $region35: #{turin_summary_forward.1} parent=1 // pred_check_branch
      %35 = sbr.rel (0) target = $region37
    $region36: #{turin_summary_forward.1} parent=1 // pred_region
      _
    $region37: #{turin_summary_forward.1} parent=1 // pred_fallthru
      _
    %v36 = vld [vmem:[%s0] sm:$0xff]
    %v37 = vld [vmem:[%s0 + $0x8] sm:$0xff]
    %v38 = vld [vmem:[%s1] sm:$0xf]
    %v39 = vld [vmem:[%s2] sm:$0x1]
    %v41 = vlaneseq
    %v42 = vshrl.u32 %v41, 7
    %v43 = vsub.s32 0, %v42
    %v44 = vrot.slane %v39, %v43
    %vm46 = vcmask 31744
    %v48 = vsel %vm46, %v36, 0
    %v51 = vsel %vm46, %v37, 0
    %vm53 = vcmask 1043456
    %v55 = vsel %vm53, %v38, 0
    %57 = vmatprep.subr.mxu0 0.0
    %58 = vmatpush1.msra.mxu0 %v55
    %59 = vmatprep.subr.mxu0 0.0
    %60 = vmatpush1.msra.mxu0 0.0
    %61 = vmatprep.subr.mxu0 0.0
    %62 = vmatpush1.msra.mxu0 0.0
    %63 = vmatprep.subr.mxu0 0.0
    %64 = vmatpush1.msra.mxu0 0.0
    %65 = vmatprep.subr.mxu0 0.0
    %66 = vmatpush1.msra.mxu0 0.0
    %67 = vmatprep.subr.mxu0 0.0
    %68 = vmatpush1.msra.mxu0 0.0
    %69 = vmatprep.subr.mxu0 0.0
    %70 = vmatpush1.msra.mxu0 0.0
    %71 = vmatprep.subr.mxu0 0.0
    %72 = vmatpush1.msra.mxu0 0.0
    %73 = vmatprep.subr.mxu0 0.0
    %74 = vmatpush1.msra.mxu0 0.0
    %75 = vmatprep.subr.mxu0 0.0
    %76 = vmatpush1.msra.mxu0 0.0
    %77 = vmatprep.subr.mxu0 0.0
    %78 = vmatpush1.msra.mxu0 0.0
    %79 = vmatprep.subr.mxu0 0.0
    %80 = vmatpush1.msra.mxu0 0.0
    %81 = vmatprep.subr.mxu0 0.0
    %82 = vmatpush1.msra.mxu0 0.0
    %83 = vmatprep.subr.mxu0 0.0
    %84 = vmatpush1.msra.mxu0 0.0
    %85 = vmatprep.subr.mxu0 0.0
    %86 = vmatpush1.msra.mxu0 0.0
    %87 = vmatprep.subr.mxu0 0.0
    %88 = vmatpush1.msra.mxu0 0.0
    %89 = vmatprep.subr.mxu0 0.0
    %90 = vmatpush1.msra.mxu0 0.0
    %91 = vmatprep.subr.mxu0 0.0
    %92 = vmatpush1.msra.mxu0 0.0
    %93 = vmatprep.subr.mxu0 0.0
    %94 = vmatpush1.msra.mxu0 0.0
    %95 = vmatprep.subr.mxu0 0.0
    %96 = vmatpush1.msra.mxu0 0.0
    %97 = vmatprep.subr.mxu0 0.0
    %98 = vmatpush1.msra.mxu0 0.0
    %99 = vmatprep.subr.mxu0 0.0
    %100 = vmatpush1.msra.mxu0 0.0
    %101 = vmatprep.subr.mxu0 0.0
    %102 = vmatpush1.msra.mxu0 0.0
    %103 = vmatprep.subr.mxu0 0.0
    %104 = vmatpush1.msra.mxu0 0.0
    %105 = vmatprep.subr.mxu0 0.0
    %106 = vmatpush1.msra.mxu0 0.0
    %107 = vmatprep.subr.mxu0 0.0
    %108 = vmatpush1.msra.mxu0 0.0
    %109 = vmatprep.subr.mxu0 0.0
    %110 = vmatpush1.msra.mxu0 0.0
    %111 = vmatprep.subr.mxu0 0.0
    %112 = vmatpush1.msra.mxu0 0.0
    %113 = vmatprep.subr.mxu0 0.0
    %114 = vmatpush1.msra.mxu0 0.0
    %115 = vmatprep.subr.mxu0 0.0
    %116 = vmatpush1.msra.mxu0 0.0
    %117 = vmatprep.subr.mxu0 0.0
    %118 = vmatpush1.msra.mxu0 0.0
    %119 = vmatprep.subr.mxu0 0.0
    %120 = vmatpush1.msra.mxu0 0.0
    %121 = vmatprep.mubr.f32.mxu0 0.0
    %122 = vmatmul.mubr.f32.gmra.mrb[0].mxu0 %v48
    %v123 = vpop.f32.mrb[0].mxu0
    %v124 = vadd.f32 %v44, %v123
    %v125 = vpop.f32.mrb[0].mxu0
    %126 = vmatprep.mubr.f32.mxu0 0.0
    %127 = vmatmul.mubr.f32.gmra.mrb[0].mxu0 %v51
    %v128 = vpop.f32.mrb[0].mxu0
    %v129 = vadd.f32 %v44, %v128
    %v130 = vpop.f32.mrb[0].mxu0
    %131 = vdwg.mxu0
    %v132 = vmax.f32 %v124, 0.0
    %v133 = vmax.f32 %v129, 0.0
    %v134 = vld [vmem:[%s3] sm:$0xff]
    %v135 = vld [vmem:[%s3 + $0x8] sm:$0xff]
    %v136 = vld [vmem:[%s3 + $0x10] sm:$0xff]
    %v137 = vld [vmem:[%s3 + $0x18] sm:$0xff]
    %v138 = vld [vmem:[%s4] sm:$0x1]
    %v140 = vlaneseq
    %v141 = vshrl.u32 %v140, 7
    %v142 = vsub.s32 0, %v141
    %v143 = vrot.slane %v138, %v142
    %vm145 = vcmask 261120
    %v147 = vsel %vm145, %v132, 0
    %v150 = vsel %vm145, %v133, 0
    %152 = vmatprep.subr.mxu0 0.0
    %153 = vmatpush1.msra.mxu0 %v134
    %154 = vmatprep.subr.mxu0 0.0
    %155 = vmatpush1.msra.mxu0 %v135
    %156 = vmatprep.subr.mxu0 0.0
    %157 = vmatpush1.msra.mxu0 %v136
    %158 = vmatprep.subr.mxu0 0.0
    %159 = vmatpush1.msra.mxu0 %v137
    %160 = vmatprep.subr.mxu0 0.0
    %161 = vmatpush1.msra.mxu0 0.0
    %162 = vmatprep.subr.mxu0 0.0
    %163 = vmatpush1.msra.mxu0 0.0
    %164 = vmatprep.subr.mxu0 0.0
    %165 = vmatpush1.msra.mxu0 0.0
    %166 = vmatprep.subr.mxu0 0.0
    %167 = vmatpush1.msra.mxu0 0.0
    %168 = vmatprep.subr.mxu0 0.0
    %169 = vmatpush1.msra.mxu0 0.0
    %170 = vmatprep.subr.mxu0 0.0
    %171 = vmatpush1.msra.mxu0 0.0
    %172 = vmatprep.subr.mxu0 0.0
    %173 = vmatpush1.msra.mxu0 0.0
    %174 = vmatprep.subr.mxu0 0.0
    %175 = vmatpush1.msra.mxu0 0.0
    %176 = vmatprep.subr.mxu0 0.0
    %177 = vmatpush1.msra.mxu0 0.0
    %178 = vmatprep.subr.mxu0 0.0
    %179 = vmatpush1.msra.mxu0 0.0
    %180 = vmatprep.subr.mxu0 0.0
    %181 = vmatpush1.msra.mxu0 0.0
    %182 = vmatprep.subr.mxu0 0.0
    %183 = vmatpush1.msra.mxu0 0.0
    %184 = vmatprep.subr.mxu0 0.0
    %185 = vmatpush1.msra.mxu0 0.0
    %186 = vmatprep.subr.mxu0 0.0
    %187 = vmatpush1.msra.mxu0 0.0
    %188 = vmatprep.subr.mxu0 0.0
    %189 = vmatpush1.msra.mxu0 0.0
    %190 = vmatprep.subr.mxu0 0.0
    %191 = vmatpush1.msra.mxu0 0.0
    %192 = vmatprep.subr.mxu0 0.0
    %193 = vmatpush1.msra.mxu0 0.0
    %194 = vmatprep.subr.mxu0 0.0
    %195 = vmatpush1.msra.mxu0 0.0
    %196 = vmatprep.subr.mxu0 0.0
    %197 = vmatpush1.msra.mxu0 0.0
    %198 = vmatprep.subr.mxu0 0.0
    %199 = vmatpush1.msra.mxu0 0.0
    %200 = vmatprep.subr.mxu0 0.0
    %201 = vmatpush1.msra.mxu0 0.0
    %202 = vmatprep.subr.mxu0 0.0
    %203 = vmatpush1.msra.mxu0 0.0
    %204 = vmatprep.subr.mxu0 0.0
    %205 = vmatpush1.msra.mxu0 0.0
    %206 = vmatprep.subr.mxu0 0.0
    %207 = vmatpush1.msra.mxu0 0.0
    %208 = vmatprep.subr.mxu0 0.0
    %209 = vmatpush1.msra.mxu0 0.0
    %210 = vmatprep.subr.mxu0 0.0
    %211 = vmatpush1.msra.mxu0 0.0
    %212 = vmatprep.subr.mxu0 0.0
    %213 = vmatpush1.msra.mxu0 0.0
    %214 = vmatprep.subr.mxu0 0.0
    %215 = vmatpush1.msra.mxu0 0.0
    %216 = vmatprep.mubr.f32.mxu0 0.0
    %217 = vmatmul.mubr.f32.gmra.mrb[0].mxu0 %v147
    %v218 = vpop.f32.mrb[0].mxu0
    %v219 = vadd.f32 %v143, %v218
    %v220 = vpop.f32.mrb[0].mxu0
    %221 = vmatprep.mubr.f32.mxu0 0.0
    %222 = vmatmul.mubr.f32.gmra.mrb[0].mxu0 %v150
    %v223 = vpop.f32.mrb[0].mxu0
    %v224 = vadd.f32 %v143, %v223
    %v225 = vpop.f32.mrb[0].mxu0
    %226 = vdwg.mxu0
    %vm227 = vcmask 162816
    %v228 = vsel %vm227, %v219, 0.0
    %v229 = vrot.slane %v228, 4
    %v230 = vadd.f32 %v228, %v229
    %v231 = vrot.slane %v230, 2
    %v232 = vadd.f32 %v230, %v231
    %v233 = vrot.slane %v232, 1
    %v234 = vadd.f32 %v232, %v233
    %v235 = vmul.f32 %v234, 0.5
    %v236 = vsel %vm227, %v224, 0.0
    %v237 = vrot.slane %v236, 4
    %v238 = vadd.f32 %v236, %v237
    %v239 = vrot.slane %v238, 2
    %v240 = vadd.f32 %v238, %v239
    %v241 = vrot.slane %v240, 1
    %v242 = vadd.f32 %v240, %v241
    %v243 = vmul.f32 %v242, 0.5
    %vm244 = vcmask 1040384
    %v245 = vsel %vm244, %v235, %v243
    %vm246 = vcmask 156672
    %247 = vst.msk [vmem:[#allocation2] sm:$0x3] %vm246, %v245
    %v248 = vld [vmem:[%s5] sm:$0xff]
    %v249 = vld [vmem:[%s5 + $0x8] sm:$0xff]
    %v250 = vld [vmem:[%s5 + $0x10] sm:$0xf]
    %v251 = vld [vmem:[%s6] sm:$0x1]
    %v253 = vlaneseq
    %v254 = vshrl.u32 %v253, 7
    %v255 = vsub.s32 0, %v254
    %v256 = vrot.slane %v251, %v255
    %v259 = vsel %vm227, %v245, 0
    %v262 = vsel %vm53, %v250, 0
    %264 = vmatprep.subr.mxu0 0.0
    %265 = vmatpush1.msra.mxu0 %v248
    %266 = vmatprep.subr.mxu0 0.0
    %267 = vmatpush1.msra.mxu0 %v249
    %268 = vmatprep.subr.mxu0 0.0
    %269 = vmatpush1.msra.mxu0 %v262
    %270 = vmatprep.subr.mxu0 0.0
    %271 = vmatpush1.msra.mxu0 0.0
    %272 = vmatprep.subr.mxu0 0.0
    %273 = vmatpush1.msra.mxu0 0.0
    %274 = vmatprep.subr.mxu0 0.0
    %275 = vmatpush1.msra.mxu0 0.0
    %276 = vmatprep.subr.mxu0 0.0
    %277 = vmatpush1.msra.mxu0 0.0
    %278 = vmatprep.subr.mxu0 0.0
    %279 = vmatpush1.msra.mxu0 0.0
    %280 = vmatprep.subr.mxu0 0.0
    %281 = vmatpush1.msra.mxu0 0.0
    %282 = vmatprep.subr.mxu0 0.0
    %283 = vmatpush1.msra.mxu0 0.0
    %284 = vmatprep.subr.mxu0 0.0
    %285 = vmatpush1.msra.mxu0 0.0
    %286 = vmatprep.subr.mxu0 0.0
    %287 = vmatpush1.msra.mxu0 0.0
    %288 = vmatprep.subr.mxu0 0.0
    %289 = vmatpush1.msra.mxu0 0.0
    %290 = vmatprep.subr.mxu0 0.0
    %291 = vmatpush1.msra.mxu0 0.0
    %292 = vmatprep.subr.mxu0 0.0
    %293 = vmatpush1.msra.mxu0 0.0
    %294 = vmatprep.subr.mxu0 0.0
    %295 = vmatpush1.msra.mxu0 0.0
    %296 = vmatprep.subr.mxu0 0.0
    %297 = vmatpush1.msra.mxu0 0.0
    %298 = vmatprep.subr.mxu0 0.0
    %299 = vmatpush1.msra.mxu0 0.0
    %300 = vmatprep.subr.mxu0 0.0
    %301 = vmatpush1.msra.mxu0 0.0
    %302 = vmatprep.subr.mxu0 0.0
    %303 = vmatpush1.msra.mxu0 0.0
    %304 = vmatprep.subr.mxu0 0.0
    %305 = vmatpush1.msra.mxu0 0.0
    %306 = vmatprep.subr.mxu0 0.0
    %307 = vmatpush1.msra.mxu0 0.0
    %308 = vmatprep.subr.mxu0 0.0
    %309 = vmatpush1.msra.mxu0 0.0
    %310 = vmatprep.subr.mxu0 0.0
    %311 = vmatpush1.msra.mxu0 0.0
    %312 = vmatprep.subr.mxu0 0.0
    %313 = vmatpush1.msra.mxu0 0.0
    %314 = vmatprep.subr.mxu0 0.0
    %315 = vmatpush1.msra.mxu0 0.0
    %316 = vmatprep.subr.mxu0 0.0
    %317 = vmatpush1.msra.mxu0 0.0
    %318 = vmatprep.subr.mxu0 0.0
    %319 = vmatpush1.msra.mxu0 0.0
    %320 = vmatprep.subr.mxu0 0.0
    %321 = vmatpush1.msra.mxu0 0.0
    %322 = vmatprep.subr.mxu0 0.0
    %323 = vmatpush1.msra.mxu0 0.0
    %324 = vmatprep.subr.mxu0 0.0
    %325 = vmatpush1.msra.mxu0 0.0
    %326 = vmatprep.subr.mxu0 0.0
    %327 = vmatpush1.msra.mxu0 0.0
    %328 = vmatprep.mubr.f32.mxu0 0.0
    %329 = vmatmul.mubr.f32.gmra.mrb[0].mxu0 %v259
    %v330 = vpop.f32.mrb[0].mxu0
    %v331 = vadd.f32 %v256, %v330
    %v332 = vpop.f32.mrb[0].mxu0
    %333 = vdwg.mxu0
    %v334 = vmax.f32 %v331, 0.0
    %v335 = vld [vmem:[%s7] sm:$0xff]
    %v336 = vld [vmem:[%s7 + $0x8] sm:$0xff]
    %v337 = vld [vmem:[%s7 + $0x10] sm:$0xf]
    %v338 = vld [vmem:[%s8] sm:$0x1]
    %v340 = vlaneseq
    %v341 = vshrl.u32 %v340, 7
    %v342 = vsub.s32 0, %v341
    %v343 = vrot.slane %v338, %v342
    %v346 = vsel %vm227, %v334, 0
    %v349 = vsel %vm53, %v337, 0
    %351 = vmatprep.subr.mxu0 0.0
    %352 = vmatpush1.msra.mxu0 %v335
    %353 = vmatprep.subr.mxu0 0.0
    %354 = vmatpush1.msra.mxu0 %v336
    %355 = vmatprep.subr.mxu0 0.0
    %356 = vmatpush1.msra.mxu0 %v349
    %357 = vmatprep.subr.mxu0 0.0
    %358 = vmatpush1.msra.mxu0 0.0
    %359 = vmatprep.subr.mxu0 0.0
    %360 = vmatpush1.msra.mxu0 0.0
    %361 = vmatprep.subr.mxu0 0.0
    %362 = vmatpush1.msra.mxu0 0.0
    %363 = vmatprep.subr.mxu0 0.0
    %364 = vmatpush1.msra.mxu0 0.0
    %365 = vmatprep.subr.mxu0 0.0
    %366 = vmatpush1.msra.mxu0 0.0
    %367 = vmatprep.subr.mxu0 0.0
    %368 = vmatpush1.msra.mxu0 0.0
    %369 = vmatprep.subr.mxu0 0.0
    %370 = vmatpush1.msra.mxu0 0.0
    %371 = vmatprep.subr.mxu0 0.0
    %372 = vmatpush1.msra.mxu0 0.0
    %373 = vmatprep.subr.mxu0 0.0
    %374 = vmatpush1.msra.mxu0 0.0
    %375 = vmatprep.subr.mxu0 0.0
    %376 = vmatpush1.msra.mxu0 0.0
    %377 = vmatprep.subr.mxu0 0.0
    %378 = vmatpush1.msra.mxu0 0.0
    %379 = vmatprep.subr.mxu0 0.0
    %380 = vmatpush1.msra.mxu0 0.0
    %381 = vmatprep.subr.mxu0 0.0
    %382 = vmatpush1.msra.mxu0 0.0
    %383 = vmatprep.subr.mxu0 0.0
    %384 = vmatpush1.msra.mxu0 0.0
    %385 = vmatprep.subr.mxu0 0.0
    %386 = vmatpush1.msra.mxu0 0.0
    %387 = vmatprep.subr.mxu0 0.0
    %388 = vmatpush1.msra.mxu0 0.0
    %389 = vmatprep.subr.mxu0 0.0
    %390 = vmatpush1.msra.mxu0 0.0
    %391 = vmatprep.subr.mxu0 0.0
    %392 = vmatpush1.msra.mxu0 0.0
    %393 = vmatprep.subr.mxu0 0.0
    %394 = vmatpush1.msra.mxu0 0.0
    %395 = vmatprep.subr.mxu0 0.0
    %396 = vmatpush1.msra.mxu0 0.0
    %397 = vmatprep.subr.mxu0 0.0
    %398 = vmatpush1.msra.mxu0 0.0
    %399 = vmatprep.subr.mxu0 0.0
    %400 = vmatpush1.msra.mxu0 0.0
    %401 = vmatprep.subr.mxu0 0.0
    %402 = vmatpush1.msra.mxu0 0.0
    %403 = vmatprep.subr.mxu0 0.0
    %404 = vmatpush1.msra.mxu0 0.0
    %405 = vmatprep.subr.mxu0 0.0
    %406 = vmatpush1.msra.mxu0 0.0
    %407 = vmatprep.subr.mxu0 0.0
    %408 = vmatpush1.msra.mxu0 0.0
    %409 = vmatprep.subr.mxu0 0.0
    %410 = vmatpush1.msra.mxu0 0.0
    %411 = vmatprep.subr.mxu0 0.0
    %412 = vmatpush1.msra.mxu0 0.0
    %413 = vmatprep.subr.mxu0 0.0
    %414 = vmatpush1.msra.mxu0 0.0
    %415 = vmatprep.mubr.f32.mxu0 0.0
    %416 = vmatmul.mubr.f32.gmra.mrb[0].mxu0 %v346
    %v417 = vpop.f32.mrb[0].mxu0
    %v418 = vadd.f32 %v343, %v417
    %v419 = vpop.f32.mrb[0].mxu0
    %420 = vdwg.mxu0
    %vm421 = vcmask 58368
    %422 = vst.msk [vmem:[#allocation4] sm:$0x3] %vm421, %v418
    // Predicated region
    $region38: #{turin_summary_forward.1} parent=1 // pred_check
      _
    $region39: #{turin_summary_forward.1} parent=1 // pred_check_branch
      %424 = sbr.rel (0) target = $region41
    $region40: #{turin_summary_forward.1} parent=1 // pred_region
      %s426 = ssub.s32 32, 32
      %427 = vsyncadd [#allocation3], %s426
      %s429 = sshll.u32 [#allocation2], 4
      %s430 = int_to_ptr.vmem [resolvable:$true] %s429
      %432 = dma.vmem_to_hbm [thread:$0]  %s430, 32, %s9, [#allocation3]
    $region41: #{turin_summary_forward.1} parent=1 // pred_fallthru
      _
    // Predicated region
    $region42: #{turin_summary_forward.1} parent=1 // pred_check
      _
    $region43: #{turin_summary_forward.1} parent=1 // pred_check_branch
      %434 = sbr.rel (0) target = $region45
    $region44: #{turin_summary_forward.1} parent=1 // pred_region
      %s436 = ssub.s32 32, 32
      %437 = vsyncadd [#allocation5], %s436
      %s439 = sshll.u32 [#allocation4], 4
      %s440 = int_to_ptr.vmem [resolvable:$true] %s439
      %442 = dma.vmem_to_hbm [thread:$0]  %s440, 32, %s10, [#allocation5]
    $region45: #{turin_summary_forward.1} parent=1 // pred_fallthru
      _
    // Predicated region
    $region46: #{turin_summary_forward.1} parent=1 // pred_check
      _
    $region47: #{turin_summary_forward.1} parent=1 // pred_check_branch
      %444 = sbr.rel (0) target = $region49
    $region48: #{turin_summary_forward.1} parent=1 // pred_region
      %445 = dma.done [#allocation3], 32
    $region49: #{turin_summary_forward.1} parent=1 // pred_fallthru
      _
    // Predicated region
    $region50: #{turin_summary_forward.1} parent=1 // pred_check
      _
    $region51: #{turin_summary_forward.1} parent=1 // pred_check_branch
      %447 = sbr.rel (0) target = $region53
    $region52: #{turin_summary_forward.1} parent=1 // pred_region
      %448 = dma.done [#allocation5], 32
    $region53: #{turin_summary_forward.1} parent=1 // pred_fallthru
      _
    %449 = vsyncpa [#allocation3], 1
    %450 = vsyncpa [#allocation5], 1

</llo_original>
